<compile_context>
chip_gen: v7x
topology: tpu7x:2x2x1
jax: 0.10.0
libtpu: 0.0.40
codegen_flags: <defaults>
</compile_context>

<pallas_src>
import functools
import math

import jax
import jax.numpy as jnp
from jax import lax
from jax.experimental import pallas as pl
from jax.experimental.pallas import tpu as pltpu


def _round_up(x, m):
    return (x + m - 1) // m * m


def _pad_rows(w, rows):
    """Zero-pad a (r, c) matrix to (rows, c)."""
    return jnp.zeros((rows, w.shape[1]), w.dtype).at[: w.shape[0]].set(w)


def _row_block(n, block_rows):
    """Row-block size; aims for >= 2 blocks so v7x megacore can shard rows."""
    n8 = _round_up(max(int(n), 1), 8)
    if n8 <= 8:
        return n8
    return min(block_rows, _round_up((n8 + 1) // 2, 8))


# ------------------ input projection: gates_x = X @ W_ih + b -----------------
def _proj_kernel(x_ref, w_ref, b_ref, o_ref):
    acc = jnp.dot(x_ref[...], w_ref[...], preferred_element_type=jnp.float32)
    o_ref[...] = (acc + b_ref[...]).astype(o_ref.dtype)


def input_projection(x2d, w_ih, bias, *, row_tile=1024):
    """Hoisted LSTM input projection: (R, K) @ (K, 4H) + bias -> (R, 4H) bf16."""
    R, K = x2d.shape
    G = w_ih.shape[1]
    Rt = min(row_tile, _round_up(R, 8))
    Rp = _round_up(R, Rt)
    x_p = jnp.pad(x2d, ((0, Rp - R), (0, 0))).astype(jnp.bfloat16)

    out = pl.pallas_call(
        _proj_kernel,
        out_shape=jax.ShapeDtypeStruct((Rp, G), jnp.bfloat16),
        grid_spec=pltpu.PrefetchScalarGridSpec(
            num_scalar_prefetch=0,
            grid=(Rp // Rt,),
            in_specs=[
                pl.BlockSpec((Rt, K), lambda i: (i, 0)),
                pl.BlockSpec((K, G), lambda i: (0, 0)),
                pl.BlockSpec((1, G), lambda i: (0, 0)),
            ],
            out_specs=pl.BlockSpec((Rt, G), lambda i: (i, 0)),
        ),
        compiler_params=pltpu.CompilerParams(
            dimension_semantics=("parallel",)),
    )(x_p, w_ih.astype(jnp.bfloat16), bias.astype(jnp.float32))
    return out[:R]


# ----------------------------- LSTM recurrence --------------------------------
def _lstm_recurrence_kernel(steps, H, apply_head, *refs):
    if apply_head:
        len_ref, gx_ref, whh_ref, hw_ref, hb_ref, out_ref, h_sc, c_sc = refs
    else:
        len_ref, gx_ref, whh_ref, out_ref, h_sc, c_sc = refs

    G = 4 * H
    Nt = h_sc.shape[0]
    j = pl.program_id(1)

    @pl.when(j == 0)
    def _():
        h_sc[...] = jnp.zeros_like(h_sc)
        c_sc[...] = jnp.zeros_like(c_sc)

    whh = whh_ref[...]                          # (4H, 4H) bf16; rows >= H are zero
    lane = lax.broadcasted_iota(jnp.int32, (Nt, G), 1)
    g_lane = (lane >= 2 * H) & (lane < 3 * H)   # lanes of the tanh ("g") gate
    # Single-tanh trick: sigmoid(x) = 0.5*tanh(0.5*x)+0.5.  Pre-scale non-g
    # lanes by 0.5, one tanh over the full tile, fma back.  Hoisted constants.
    scale = jnp.where(g_lane, 1.0, 0.5).astype(jnp.float32)   # (Nt, G)
    offset = 1.0 - scale                                      # 0 on g, 0.5 else
    # Hoisted lane-broadcast of per-row lengths (packed-sequence emulation).
    lens_b = jnp.broadcast_to(len_ref[...], (Nt, G))           # (Nt, G) int32
    t0 = j * steps

    def step(t, carry):
        h, c = carry
        gx = gx_ref[t].astype(jnp.float32)       # contiguous (Nt, 4H) slab, bf16
        gates = gx + jnp.dot(h.astype(jnp.bfloat16), whh,
                             preferred_element_type=jnp.float32)
        th = jnp.tanh(gates * scale)             # one EUP tanh over the tile
        act = th * scale + offset                # [sig(i)|sig(f)|tanh(g)|sig(o)]
        # XLU rolls realign the f / g / o gate groups onto lanes [0, H)
        # (jnp.roll semantics: output lane l takes lane (l - shift) mod 4H).
        f_al = pltpu.roll(act, shift=3 * H, axis=1)
        g_al = pltpu.roll(act, shift=2 * H, axis=1)
        o_al = pltpu.roll(act, shift=1 * H, axis=1)
        c_new = f_al * c + act * g_al            # valid on lanes [0, H)
        h_new = o_al * jnp.tanh(c_new)
        # State only advances while step < length -> h ends at step (length-1).
        active = (t0 + t) < lens_b
        return jnp.where(active, h_new, h), jnp.where(active, c_new, c)

    h, c = lax.fori_loop(0, steps, step, (h_sc[...], c_sc[...]),
                         unroll=max(1, min(4, steps)))
    h_sc[...] = h
    c_sc[...] = c

    @pl.when(j == pl.num_programs(1) - 1)
    def _():
        if apply_head:
            # Fused linear head, bf16 MXU matmul (head_w rows >= H are zero so
            # junk lanes of h do not contribute); bias add stays f32.
            out_ref[...] = (
                jnp.dot(h.astype(jnp.bfloat16), hw_ref[...],
                        preferred_element_type=jnp.float32) + hb_ref[...]
            )
        else:
            # Keep the "(N,128) with lanes [0,H) meaningful, rest zero" contract.
            out_ref[...] = jnp.where(lane < H, h, 0.0)


def lstm_final_hidden(gates_x, lengths, w_hh, head_w=None, head_b=None,
                      *, block_rows=128, time_block=32):
    """LSTM recurrence over precomputed, TIME-MAJOR input gates.

    gates_x : (T, N, 4H) bf16/f32 -- X @ W_ih + (b_ih + b_hh), gates [i, f, g, o]
    lengths : (N,) int            -- per-row sequence lengths
    w_hh    : (H, 4H)             -- recurrent weights
    head_w/head_b: optional fused linear head (H, C) / (1, C).
    Returns (N, 128) f32: lanes [0, H) hold the final hidden state (rest zero),
    or lanes [0, C) hold h_final @ head_w + head_b when a head is given.
    """
    T, N, G = gates_x.shape
    H = w_hh.shape[0]
    assert G == 4 * H and G % 128 == 0, "4*hidden_size must be a multiple of 128"
    # NOTE: the lane-roll gate realignment is validated for 4H == 128 (H == 32).

    steps = min(T, time_block)              # time steps per grid invocation
    Tp = _round_up(T, steps)
    Nt = _row_block(N, block_rows)          # >= 2 row blocks when possible (v7x)
    Np = _round_up(N, Nt)

    gx = jnp.pad(gates_x.astype(jnp.bfloat16),
                 ((0, Tp - T), (0, Np - N), (0, 0)))
    lens = jnp.pad(lengths.astype(jnp.int32), (0, Np - N)).reshape(Np, 1)
    whh_p = _pad_rows(w_hh.astype(jnp.bfloat16), G)

    apply_head = head_w is not None
    in_specs = [
        pl.BlockSpec((Nt, 1), lambda i, j: (i, 0)),             # lengths
        pl.BlockSpec((steps, Nt, G), lambda i, j: (j, i, 0)),   # time-major gates
        pl.BlockSpec((G, G), lambda i, j: (0, 0)),              # W_hh (zero-padded)
    ]
    args = [lens, gx, whh_p]
    if apply_head:
        out_w = 128
        C = head_w.shape[1]
        assert C <= out_w
        hw_p = jnp.zeros((G, out_w), jnp.bfloat16).at[:H, :C].set(
            head_w.astype(jnp.bfloat16))
        hb_p = jnp.zeros((1, out_w), jnp.float32).at[:, :C].set(
            head_b.reshape(1, C).astype(jnp.float32))
        in_specs += [pl.BlockSpec((G, out_w), lambda i, j: (0, 0)),
                     pl.BlockSpec((1, out_w), lambda i, j: (0, 0))]
        args += [hw_p, hb_p]
    else:
        out_w = G    # == 128 for H == 32; final hidden lives on lanes [0, H)

    kernel = functools.partial(_lstm_recurrence_kernel, steps, H, apply_head)
    out = pl.pallas_call(
        kernel,
        out_shape=jax.ShapeDtypeStruct((Np, out_w), jnp.float32),
        grid_spec=pltpu.PrefetchScalarGridSpec(
            num_scalar_prefetch=0,
            grid=(Np // Nt, Tp // steps),
            in_specs=in_specs,
            out_specs=pl.BlockSpec((Nt, out_w), lambda i, j: (i, 0)),
            scratch_shapes=[pltpu.VMEM((Nt, G), jnp.float32),   # h state
                            pltpu.VMEM((Nt, G), jnp.float32)],  # c state
        ),
        compiler_params=pltpu.CompilerParams(
            dimension_semantics=("parallel", "arbitrary")),
    )(*args)
    return out[:N]


# ---------------------------- Parameter init ----------------------------------
def init_params(key, vocab_size, embedding_size, hidden_size, num_classes=1):
    E, H = embedding_size, hidden_size
    ks = jax.random.split(key, 9)
    s = 1.0 / math.sqrt(H)

    def u(k, shape, scale):
        return jax.random.uniform(k, shape, jnp.float32, -scale, scale)

    emb = jax.random.normal(ks[0], (vocab_size, E), jnp.float32) * 0.1
    emb = emb.at[0].set(0.0)   # padding_idx=0 row is zero, like nn.Embedding

    return dict(
        embedding=emb,
        tok_w_ih=u(ks[1], (E, 4 * H), s),
        tok_w_hh=u(ks[2], (H, 4 * H), s),
        tok_b=u(ks[3], (1, 4 * H), s),        # b_ih + b_hh combined
        ins_w_ih=u(ks[4], (H, 4 * H), s),
        ins_w_hh=u(ks[5], (H, 4 * H), s),
        ins_b=u(ks[6], (1, 4 * H), s),
        lin_w=u(ks[7], (H, num_classes), s),
        lin_b=u(ks[8], (1, num_classes), s),
    )


# -------------------------------- Forward --------------------------------------
def ithemal_forward(params, batch):
    padded_tokens = batch['padded_tokens']               # (total_instrs, T_tok) int
    token_lengths = batch['token_lengths']                # (total_instrs,) int
    instruction_lengths = batch['instruction_lengths']    # python list (static)
    instr_boundaries = batch['instr_boundaries']          # python list, len batch+1

    H = params['tok_w_hh'].shape[0]
    G = 4 * H
    total_instrs, t_tok = padded_tokens.shape

    # ---- token level --------------------------------------------------------
    # Time-major embedding lookup (XLA gather glue): (T_tok, I, E).
    emb_tm = jnp.take(params['embedding'], padded_tokens.T, axis=0)
    E = emb_tm.shape[-1]

    gx_tok = input_projection(emb_tm.reshape(t_tok * total_instrs, E),
                              params['tok_w_ih'], params['tok_b'])
    gx_tok = gx_tok.reshape(t_tok, total_instrs, G)          # (T, I, 4H) bf16
    instr_hidden = lstm_final_hidden(gx_tok, token_lengths,
                                     params['tok_w_hh'])     # (I, 128) f32

    # ---- regroup instructions into blocks: one time-major gather ------------
    batch_size = len(instruction_lengths)
    max_instrs = int(max(int(l) for l in instruction_lengths))
    idx_rows, valid_rows = [], []
    for m in range(max_instrs):
        ir, vr = [], []
        for b in range(batch_size):
            s = int(instr_boundaries[b])
            l = int(instruction_lengths[b])
            ir.append(s + m if m < l else 0)
            vr.append(1.0 if m < l else 0.0)
        idx_rows.append(ir)
        valid_rows.append(vr)
    idx = jnp.asarray(idx_rows, jnp.int32)                   # (M, B)
    valid = jnp.asarray(valid_rows, jnp.float32)             # (M, B)
    instr_tm = jnp.take(instr_hidden, idx, axis=0) * valid[:, :, None]  # (M, B, 128)

    # ---- instruction level ---------------------------------------------------
    gx_ins = input_projection(instr_tm.reshape(max_instrs * batch_size, G),
                              _pad_rows(params['ins_w_ih'], G),
                              params['ins_b'])
    gx_ins = gx_ins.reshape(max_instrs, batch_size, G)        # (M, B, 4H) bf16
    instr_len_arr = jnp.asarray([int(l) for l in instruction_lengths], jnp.int32)
    out128 = lstm_final_hidden(gx_ins, instr_len_arr, params['ins_w_hh'],
                               head_w=params['lin_w'], head_b=params['lin_b'])
    return out128[:, 0]                                       # (batch,)


# --------------------------------- Main -----------------------------------------
if __name__ == "__main__":
    vocab_size = 32
    embedding_size = 16
    hidden_size = 32
    num_classes = 1

    key = jax.random.PRNGKey(0)
    k_param, k_tok, k_tgt = jax.random.split(key, 3)
    params = init_params(k_param, vocab_size, embedding_size, hidden_size,
                         num_classes)

    # Synthetic batch: 2 basic blocks, 5 instructions total, <=8 tokens each.
    total_instrs = 5
    max_tokens = 8
    token_lengths = jnp.array([5, 3, 8, 2, 4], jnp.int32)
    instr_boundaries = [0, 3, 5]                 # block0: instrs 0..2, block1: 3..4
    instruction_lengths = [3, 2]                 # sorted descending (enforce_sorted)

    tok = jax.random.randint(k_tok, (total_instrs, max_tokens), 1, vocab_size,
                             jnp.int32)
    col = jnp.arange(max_tokens, dtype=jnp.int32)[None, :]
    padded_tokens = jnp.where(col < token_lengths[:, None], tok, 0)  # pad w/ idx 0

    batch = dict(
        padded_tokens=padded_tokens,
        token_lengths=token_lengths,
        instruction_lengths=instruction_lengths,
        instr_boundaries=instr_boundaries,
        targets=jax.random.normal(k_tgt, (2,), jnp.float32),  # unused by forward
    )

    out = ithemal_forward(params, batch)
    out = jax.block_until_ready(out)
    assert out.shape == (2,), out.shape
    print("KERNEL_OK")
</pallas_src>

<mosaic_0001>
module attributes {stable_mosaic.version = 11 : i64} {
  func.func @_proj_kernel(%arg0: i32, %arg1: memref<40x16xbf16, #tpu.memory_space<vmem>>, %arg2: memref<16x128xbf16, #tpu.memory_space<vmem>>, %arg3: memref<1x128xf32, #tpu.memory_space<vmem>>, %arg4: memref<40x128xbf16, #tpu.memory_space<vmem>>) attributes {dimension_semantics = [#tpu.dimension_semantics<parallel>], iteration_bounds = array<i64: 1>, scalar_prefetch = 0 : i64, scratch_operands = 0 : i64, tpu.core_type = #tpu.core_type<tc>, window_params = [{transform_indices = @transform_0, window_bounds = array<i64: 40, 16>}, {pipeline_mode = #tpu.pipeline_mode<synchronous>, transform_indices = @transform_1, window_bounds = array<i64: 16, 128>}, {pipeline_mode = #tpu.pipeline_mode<synchronous>, transform_indices = @transform_2, window_bounds = array<i64: 1, 128>}, {transform_indices = @transform_3, window_bounds = array<i64: 40, 128>}]} {
    %c0 = arith.constant 0 : index
    %c0_0 = arith.constant 0 : index
    %0 = vector.load %arg1[%c0, %c0_0] : memref<40x16xbf16, #tpu.memory_space<vmem>>, vector<40x16xbf16>
    %c0_1 = arith.constant 0 : index
    %c0_2 = arith.constant 0 : index
    %1 = vector.load %arg2[%c0_1, %c0_2] : memref<16x128xbf16, #tpu.memory_space<vmem>>, vector<16x128xbf16>
    %cst = arith.constant dense<0.000000e+00> : vector<40x128xf32>
    %2 = tpu.matmul %0, %1, %cst {dimension_numbers = #tpu.dot_dimension_numbers<[1], [0], [0], [1], [0, 0, 1, 1], [], []>} : vector<40x16xbf16>, vector<16x128xbf16>, vector<40x128xf32> -> vector<40x128xf32>
    %c0_3 = arith.constant 0 : index
    %c0_4 = arith.constant 0 : index
    %3 = vector.load %arg3[%c0_3, %c0_4] : memref<1x128xf32, #tpu.memory_space<vmem>>, vector<1x128xf32>
    %4 = vector.broadcast %3 : vector<1x128xf32> to vector<40x128xf32>
    %5 = arith.addf %2, %4 : vector<40x128xf32>
    %6 = arith.truncf %5 : vector<40x128xf32> to vector<40x128xbf16>
    %c0_5 = arith.constant 0 : index
    %c0_6 = arith.constant 0 : index
    %7 = vector.load %arg4[%c0_5, %c0_6] : memref<40x128xbf16, #tpu.memory_space<vmem>>, vector<40x128xbf16>
    tpu.vector_store %arg4[%c0_5, %c0_6], %6 {strides = array<i32>} : memref<40x128xbf16, #tpu.memory_space<vmem>>, vector<40x128xbf16>,
    return
  }
  func.func @transform_0(%arg0: i32) -> (i32, i32) {
    %c0_i32 = arith.constant 0 : i32
    %c0_i32_0 = arith.constant 0 : i32
    return %arg0, %c0_i32 : i32, i32
  }
  func.func @transform_1(%arg0: i32) -> (i32, i32) {
    %c0_i32 = arith.constant 0 : i32
    %c0_i32_0 = arith.constant 0 : i32
    %c0_i32_1 = arith.constant 0 : i32
    return %c0_i32, %c0_i32_0 : i32, i32
  }
  func.func @transform_2(%arg0: i32) -> (i32, i32) {
    %c0_i32 = arith.constant 0 : i32
    %c0_i32_0 = arith.constant 0 : i32
    %c0_i32_1 = arith.constant 0 : i32
    return %c0_i32, %c0_i32_0 : i32, i32
  }
  func.func @transform_3(%arg0: i32) -> (i32, i32) {
    %c0_i32 = arith.constant 0 : i32
    %c0_i32_0 = arith.constant 0 : i32
    return %arg0, %c0_i32 : i32, i32
  }
}

</mosaic_0001>

<llo_original>
// kernel: tpu_custom_call.1
$region0: #{tpu_custom_call.1}
  #allocation0 [shape = 'u32[]', space=smem, size = 0x4, offset = 0x4, fixed_abs, tag = 'smem constant byte address 0x4 - core index']
  #allocation1 [shape = 'u32[144,128]{1,0:T(1,128)}', space=vmem, size = 0x12000, scoped, tag = 'internal scratch']
  %s0 = inlined_call_operand.vmem [shape: bf16[40,16], index: 0, kind: input, shape index: {}]
  %s1 = inlined_call_operand.vmem [shape: bf16[16,128], index: 1, kind: input, shape index: {}]
  %s2 = inlined_call_operand.vmem [shape: f32[1,128], index: 2, kind: input, shape index: {}]
  %s3 = inlined_call_operand.hbm [shape: bf16[40,128], index: 3, kind: output, shape index: {}]
  %s4 = sld [smem:[#allocation0]]
  $region22: #{tpu_custom_call.1} parent=0
    _
  %s6 = ssub.s32 1, %s4
  %s7 = scalar_select 0, %s6, %s4
  $region1: #{tpu_custom_call.1} parent=0
    #allocation2 [shape = 'u8[10240]{0}', space=vmem, size = 0x2800, scoped, tag = 'output window, operand 0, single buffered']
    #allocation3 [shape = 's32[1]{0}', space=sflag, size = 0x4, scoped, tag = 'scoped memory for tpu_custom_call.1']
    %8 = vsyncpa [#allocation3], 0
    // Predicated region
    $region2: #{tpu_custom_call.1} parent=1 // pred_check
      _
    $region3: #{tpu_custom_call.1} parent=1 // pred_check_branch
      %10 = sbr.rel (0) target = $region5
    $region4: #{tpu_custom_call.1} parent=1 // pred_region
      _
    $region5: #{tpu_custom_call.1} parent=1 // pred_fallthru
      _
    // Predicated region
    $region6: #{tpu_custom_call.1} parent=1 // pred_check
      _
    $region7: #{tpu_custom_call.1} parent=1 // pred_check_branch
      %12 = sbr.rel (0) target = $region9
    $region8: #{tpu_custom_call.1} parent=1 // pred_region
      _
    $region9: #{tpu_custom_call.1} parent=1 // pred_fallthru
      _
    // Predicated region
    $region10: #{tpu_custom_call.1} parent=1 // pred_check
      _
    $region11: #{tpu_custom_call.1} parent=1 // pred_check_branch
      %14 = sbr.rel (0) target = $region13
    $region12: #{tpu_custom_call.1} parent=1 // pred_region
      _
    $region13: #{tpu_custom_call.1} parent=1 // pred_fallthru
      _
    %v16 = vld [vmem:[%s0] sm:$0xf]
    %v17 = vld [vmem:[%s0 + $0x4] sm:$0xf]
    %v18 = vld [vmem:[%s0 + $0x8] sm:$0xf]
    %v19 = vld [vmem:[%s0 + $0xc] sm:$0xf]
    %v20 = vld [vmem:[%s0 + $0x10] sm:$0xf]
    %v21 = vld [vmem:[%s1] sm:$0xf]
    %v22 = vld [vmem:[%s1 + $0x4] sm:$0xf]
    %v23 = vld [vmem:[%s2] sm:$0x1]
    %v25 = vlaneseq
    %v26 = vshrl.u32 %v25, 7
    %v27 = vsub.s32 0, %v26
    %v28 = vrot.slane %v23, %v27
    %v35 = vunpack.c.l.b16 %v16
    %v36 = vunpack.c.l.b16 %v17
    %v37 = vunpack.c.l.b16 %v18
    %v38 = vunpack.c.l.b16 %v19
    %v39 = vunpack.c.l.b16 %v20
    %v40 = vpack.c.b16 %v36, %v35
    %v41 = vpack.c.b16 %v38, %v37
    %v42 = vpack.c.b16 %v39, %v39
    %v45 = vunpack.c.l.b16 %v21
    %v46 = vunpack.c.l.b16 %v22
    %v47 = vpack.c.b16 %v46, %v45
    %vm49 = vcmask 130048
    %v51 = vsel %vm49, %v40, 0
    %v54 = vsel %vm49, %v41, 0
    %v57 = vsel %vm49, %v42, 0
    %59 = vmatprep.subr.bf16.mxu0 0
    %60 = vmatpush1.bf16.msra.mxu0 %v47
    %61 = vmatprep.subr.bf16.mxu0 0
    %62 = vmatpush1.bf16.msra.mxu0 0
    %63 = vmatprep.subr.bf16.mxu0 0
    %64 = vmatpush1.bf16.msra.mxu0 0
    %65 = vmatprep.subr.bf16.mxu0 0
    %66 = vmatpush1.bf16.msra.mxu0 0
    %67 = vmatprep.subr.bf16.mxu0 0
    %68 = vmatpush1.bf16.msra.mxu0 0
    %69 = vmatprep.subr.bf16.mxu0 0
    %70 = vmatpush1.bf16.msra.mxu0 0
    %71 = vmatprep.subr.bf16.mxu0 0
    %72 = vmatpush1.bf16.msra.mxu0 0
    %73 = vmatprep.subr.bf16.mxu0 0
    %74 = vmatpush1.bf16.msra.mxu0 0
    %75 = vmatprep.subr.bf16.mxu0 0
    %76 = vmatpush1.bf16.msra.mxu0 0
    %77 = vmatprep.subr.bf16.mxu0 0
    %78 = vmatpush1.bf16.msra.mxu0 0
    %79 = vmatprep.subr.bf16.mxu0 0
    %80 = vmatpush1.bf16.msra.mxu0 0
    %81 = vmatprep.subr.bf16.mxu0 0
    %82 = vmatpush1.bf16.msra.mxu0 0
    %83 = vmatprep.subr.bf16.mxu0 0
    %84 = vmatpush1.bf16.msra.mxu0 0
    %85 = vmatprep.subr.bf16.mxu0 0
    %86 = vmatpush1.bf16.msra.mxu0 0
    %87 = vmatprep.subr.bf16.mxu0 0
    %88 = vmatpush1.bf16.msra.mxu0 0
    %89 = vmatprep.subr.bf16.mxu0 0
    %90 = vmatpush1.bf16.msra.mxu0 0
    %91 = vmatprep.mubr.bf16.mxu0 0
    %92 = vmatmul.mubr.bf16.gmra.mrb[0].mxu0 %v51
    %v93 = vpop.f32.mrb[0].mxu0
    %v94 = vadd.f32 %v28, %v93
    %v95 = vpop.f32.mrb[0].mxu0
    %v96 = vpop.f32.mrb[0].mxu0
    %v97 = vadd.f32 %v28, %v96
    %v98 = vpop.f32.mrb[0].mxu0
    %99 = vmatprep.mubr.bf16.mxu0 0
    %100 = vmatmul.mubr.bf16.gmra.mrb[0].mxu0 %v54
    %v101 = vpop.f32.mrb[0].mxu0
    %v102 = vadd.f32 %v28, %v101
    %v103 = vpop.f32.mrb[0].mxu0
    %v104 = vpop.f32.mrb[0].mxu0
    %v105 = vadd.f32 %v28, %v104
    %v106 = vpop.f32.mrb[0].mxu0
    %107 = vmatprep.mubr.bf16.mxu0 0
    %108 = vmatmul.mubr.bf16.gmra.mrb[0].mxu0 %v57
    %v109 = vpop.f32.mrb[0].mxu0
    %v110 = vadd.f32 %v28, %v109
    %v111 = vpop.f32.mrb[0].mxu0
    %v112 = vpop.f32.mrb[0].mxu0
    %v113 = vpop.f32.mrb[0].mxu0
    %114 = vdwg.mxu0
    %v115 = vpack.c.bf16 %v97, %v94
    %v116 = vpack.c.bf16 %v105, %v102
    %v117 = vpack.c.bf16 %v110, %v110
    %v121 = vunpack.c.l.b16 %v115
    %v122 = vunpack.c.h.b16 %v115
    %v123 = vunpack.c.l.b16 %v116
    %v124 = vunpack.c.h.b16 %v116
    %v125 = vunpack.c.l.b16 %v117
    %v126 = vpack.c.b16 %v121, %v121
    %v127 = vpack.c.b16 %v122, %v122
    %v128 = vpack.c.b16 %v123, %v123
    %v129 = vpack.c.b16 %v124, %v124
    %v130 = vpack.c.b16 %v125, %v125
    %136 = vst [vmem:[#allocation2] sm:$0xf] %v126
    %137 = vst [vmem:[#allocation2 + $0x4] sm:$0xf] %v127
    %138 = vst [vmem:[#allocation2 + $0x8] sm:$0xf] %v128
    %139 = vst [vmem:[#allocation2 + $0xc] sm:$0xf] %v129
    %140 = vst [vmem:[#allocation2 + $0x10] sm:$0xf] %v130
    // Predicated region
    $region14: #{tpu_custom_call.1} parent=1 // pred_check
      _
    $region15: #{tpu_custom_call.1} parent=1 // pred_check_branch
      %142 = sbr.rel (0) target = $region17
    $region16: #{tpu_custom_call.1} parent=1 // pred_region
      %s144 = ssub.s32 320, 320
      %145 = vsyncadd [#allocation3], %s144
      %s146 = sshll.u32 [#allocation2], 4
      %s147 = int_to_ptr.vmem [resolvable:$true] %s146
      %152 = dma.vmem_to_hbm [thread:$0]  %s147, 320, %s3, [#allocation3], 64, 64, 4
    $region17: #{tpu_custom_call.1} parent=1 // pred_fallthru
      _
    // Predicated region
    $region18: #{tpu_custom_call.1} parent=1 // pred_check
      _
    $region19: #{tpu_custom_call.1} parent=1 // pred_check_branch
      %154 = sbr.rel (0) target = $region21
    $region20: #{tpu_custom_call.1} parent=1 // pred_region
      %155 = dma.done [#allocation3], 320
    $region21: #{tpu_custom_call.1} parent=1 // pred_fallthru
      _
    %156 = vsyncpa [#allocation3], 1

</llo_original>
